<compile_context>
chip_gen: v6e
topology: v6e:2x2x1
jax: 0.10.0
libtpu: 0.0.40
codegen_flags: <defaults>
</compile_context>

<pallas_src>
import math

import jax
import jax.numpy as jnp
from jax.experimental import pallas as pl
from jax.experimental.pallas import tpu as pltpu


def _round_up(x, m):
    return ((x + m - 1) // m) * m


def _make_aligner_kernel(tile_b):
    def kernel(a_ref, b_ref, wbd_ref, out_ref):
        # a_ref   : (TA, Da)        f32  actor projections (row tile)
        # b_ref   : (1, 1, TB*Da)   f32  flattened bill projections (column tile)
        # wbd_ref : (TB*Da, TB*Tp)  kron(I_TB, Wt^T) in compute dtype (grid-invariant)
        # out_ref : (TA, TB*Tp)     lane-dense flat output tile
        a = a_ref[...]
        # Lane-replicate the actor tile TB times with copy/XLU work (rides otherwise
        # idle slots) instead of burning an MXU matmul on a pure data copy.
        a_rep = jnp.concatenate([a] * tile_b, axis=-1)              # (TA, TB*Da)
        # add + tanh kept in f32 (v5e VPU/EUP have no bf16); tanh goes to the EUP slot.
        fusion = jnp.tanh(a_rep + b_ref[0])                          # (TA, TB*Da)
        # MXU operands in the compute dtype (bf16 by default), f32 accumulation.
        out = jnp.dot(fusion.astype(wbd_ref.dtype), wbd_ref[...],
                      preferred_element_type=jnp.float32)            # (TA, TB*Tp)
        out_ref[...] = out.astype(out_ref.dtype)
    return kernel


def _pick_tile_b(T, max_tile=32):
    """Smallest 8-aligned column tile whose flat output width tile_b*T is a multiple of
    128 (minimum lane-dense width -> minimum block-diagonal redundancy & w_bd VMEM).
    If none exists up to `max_tile`, keep tile_b = 8 and let the caller zero-pad T."""
    for tb in range(8, max_tile + 1, 8):
        if (tb * T) % 128 == 0:
            return tb
    return 8


def _pick_tile_a(Na, align, cap=512):
    """Row tile: multiple of `align`, as large as practical (<= cap) while keeping the
    row padding small.  Big row tiles amortise per-grid-step overhead and keep the DMA
    near the HBM roofline (review: raise the old 128 cap to 512)."""
    na_aligned = _round_up(Na, align)
    if na_aligned <= cap:
        return na_aligned                       # single row tile
    pad_budget = max(na_aligned - Na, Na // 16)
    t = (cap // align) * align
    while t > align:
        if _round_up(Na, t) - Na <= pad_budget:
            return t
        t -= align
    return align


def contextual_topic_aligner(actor_emb, bill_emb, w_actor, w_bill, w_topic, *,
                             tile_a=None, tile_b=None,
                             out_dtype=jnp.bfloat16, compute_dtype=jnp.bfloat16,
                             vmem_limit_bytes=None):
    """actor_emb: (Na, Da_in), bill_emb: (Nb, Db).
    Weights in PyTorch nn.Linear layout (out_features, in_features):
      w_actor: (Da, Da_in), w_bill: (Da, Db), w_topic: (T, Da).
    Returns (Na, Nb, T) in `out_dtype`."""
    Na, Da_in = actor_emb.shape
    Nb, Db = bill_emb.shape
    Da = w_actor.shape[0]
    T = w_topic.shape[0]
    assert w_actor.shape == (Da, Da_in) and w_bill.shape == (Da, Db)
    assert w_topic.shape == (T, Da)

    out_dtype = jnp.dtype(out_dtype)
    compute_dtype = jnp.dtype(compute_dtype)

    # --- hoisted, grid-invariant projections (plain XLA matmuls) --------------------
    a_proj = (actor_emb @ w_actor.T).astype(jnp.float32)     # (Na, Da)
    b_proj = (bill_emb @ w_bill.T).astype(jnp.float32)       # (Nb, Da)
    wt_t = w_topic.T.astype(jnp.float32)                      # (Da, T)

    # --- tile selection ---------------------------------------------------------------
    align_a = 16 if out_dtype.itemsize < 4 else 8             # bf16 sublane packing
    if tile_a is None:
        tile_a = _pick_tile_a(Na, align_a)
    assert tile_a % align_a == 0, "tile_a must respect output sublane packing"
    if tile_b is None:
        tile_b = _pick_tile_b(T)
    assert tile_b % 8 == 0, "tile_b must be 8-aligned"
    # Minimal topic padding so tile_b*T_pad is a multiple of 128 (always lane-dense
    # stores; bounded fallback instead of a giant w_bd).
    T_pad = _round_up(T, 128 // math.gcd(tile_b, 128))

    Na_pad = _round_up(Na, tile_a)
    Nb_pad = _round_up(Nb, tile_b)
    if Na_pad != Na:
        a_proj = jnp.pad(a_proj, ((0, Na_pad - Na), (0, 0)))
    if Nb_pad != Nb:
        b_proj = jnp.pad(b_proj, ((0, Nb_pad - Nb), (0, 0)))
    if T_pad != T:
        wt_t = jnp.pad(wt_t, ((0, 0), (0, T_pad - T)))

    # --- small grid-invariant structured weight ----------------------------------------
    # kron(I_tile_b, Wt^T): block-diagonal, so ONE MXU matmul emits the whole lane-flat
    # (tile_a, tile_b*T_pad) output tile.  Kept minimal (small tile_b) and cast to the
    # MXU compute dtype (bf16) -> tens of KiB, so default double-buffering is free.
    w_bd = jnp.kron(jnp.eye(tile_b, dtype=jnp.float32), wt_t).astype(compute_dtype)
    # Flatten bill projections per column tile so the kernel never reshapes lanes.
    b_blocks = b_proj.reshape(Nb_pad // tile_b, 1, tile_b * Da)

    grid = (Na_pad // tile_a, Nb_pad // tile_b)  # both "parallel": v7x megacore splits
                                                 # whichever axis has extent >= 2.

    # --- explicit VMEM budget (review: v7x has 64 MiB physical / 32 MiB default scoped)
    if vmem_limit_bytes is None:
        dbl = 2  # Pallas double-buffers every BlockSpec operand by default
        bufs = dbl * (tile_a * Da * 4                                               # actor tile
                      + tile_b * Da * 4                                             # bill tile
                      + (tile_b * Da) * (tile_b * T_pad) * compute_dtype.itemsize   # w_bd
                      + tile_a * tile_b * T_pad * out_dtype.itemsize)               # out tile
        scratch = 8 * tile_a * tile_b * Da * 4   # fusion / a_rep intermediates + spill room
        vmem_limit_bytes = int(bufs + scratch + (16 << 20))

    cost = pl.CostEstimate(
        # Actual MXU MACs (includes the tile_b x block-diagonal redundancy).
        flops=2 * Na_pad * Nb_pad * tile_b * Da * T_pad,
        transcendentals=Na_pad * Nb_pad * Da,                            # tanh count
        bytes_accessed=(Na_pad * Nb_pad * T_pad * out_dtype.itemsize     # writeback (dominant)
                        + grid[1] * Na_pad * Da * 4                       # actor tiles
                        + grid[0] * Nb_pad * Da * 4                       # bill tiles
                        + grid[0] * grid[1] * w_bd.size * compute_dtype.itemsize),
    )

    out_flat = pl.pallas_call(
        _make_aligner_kernel(tile_b),
        out_shape=jax.ShapeDtypeStruct((Na_pad, Nb_pad * T_pad), out_dtype),
        grid_spec=pltpu.PrefetchScalarGridSpec(
            num_scalar_prefetch=0,
            grid=grid,
            in_specs=[
                pl.BlockSpec((tile_a, Da), lambda i, j: (i, 0)),              # actor tile
                pl.BlockSpec((1, 1, tile_b * Da), lambda i, j: (j, 0, 0)),    # bill tile (flat)
                # Grid-invariant (constant index_map -> DMA'd once); at the minimal
                # tile_b it is tiny, so no pl.Buffered(1) single-buffering is needed.
                pl.BlockSpec((tile_b * Da, tile_b * T_pad), lambda i, j: (0, 0)),
            ],
            out_specs=pl.BlockSpec((tile_a, tile_b * T_pad), lambda i, j: (i, j)),
        ),
        compiler_params=pltpu.CompilerParams(
            dimension_semantics=("parallel", "parallel"),
            vmem_limit_bytes=vmem_limit_bytes,
        ),
        cost_estimate=cost,
    )(a_proj, b_blocks, w_bd)

    out = out_flat.reshape(Na_pad, Nb_pad, T_pad)
    return out[:Na, :Nb, :T]


if __name__ == "__main__":
    # Small synthetic shapes consistent with the module.
    # TODO(synk): num_topics comes from torch.load('GNN/policy_embeddings.pt') in the
    # original; it is fixed to 16 here since no file I/O is allowed.
    Na, Nb = 16, 16
    actor_dim, bill_dim = 32, 48
    num_topics = 16

    key = jax.random.PRNGKey(0)
    k1, k2, k3, k4, k5 = jax.random.split(key, 5)

    actor_emb = jax.random.normal(k1, (Na, actor_dim), dtype=jnp.float32)
    bill_emb = jax.random.normal(k2, (Nb, bill_dim), dtype=jnp.float32)

    # nn.Linear weights (out_features, in_features), bias=False.
    w_actor = jax.random.uniform(k3, (actor_dim, actor_dim), jnp.float32, -1.0, 1.0) / jnp.sqrt(actor_dim)
    w_bill = jax.random.uniform(k4, (actor_dim, bill_dim), jnp.float32, -1.0, 1.0) / jnp.sqrt(bill_dim)
    w_topic = jax.random.uniform(k5, (num_topics, actor_dim), jnp.float32, -1.0, 1.0) / jnp.sqrt(actor_dim)

    # Reference (plain JAX) forward semantics.
    a = actor_emb @ w_actor.T
    b = bill_emb @ w_bill.T
    ref = jnp.tanh(a[:, None, :] + b[None, :, :]) @ w_topic.T

    # Production path: bf16 MXU operands + bf16 writeback (kernel is writeback-bound).
    out_bf16 = contextual_topic_aligner(actor_emb, bill_emb, w_actor, w_bill, w_topic)
    out_bf16 = jax.block_until_ready(out_bf16)
    assert out_bf16.shape == (Na, Nb, num_topics)
    assert out_bf16.dtype == jnp.bfloat16
    assert jnp.allclose(out_bf16.astype(jnp.float32), ref, atol=4e-2, rtol=4e-2)

    # f32 sanity path: exact semantics check against the reference (tight tolerance).
    out_f32 = contextual_topic_aligner(actor_emb, bill_emb, w_actor, w_bill, w_topic,
                                       out_dtype=jnp.float32, compute_dtype=jnp.float32)
    out_f32 = jax.block_until_ready(out_f32)
    assert out_f32.shape == (Na, Nb, num_topics)
    assert jnp.allclose(out_f32, ref, atol=2e-5, rtol=2e-5)

    print("KERNEL_OK")
</pallas_src>

<mosaic_0001>
module attributes {stable_mosaic.version = 11 : i64} {
  func.func @kernel(%arg0: i32, %arg1: i32, %arg2: memref<16x32xf32, #tpu.memory_space<vmem>>, %arg3: memref<1x1x256xf32, #tpu.memory_space<vmem>>, %arg4: memref<256x128xbf16, #tpu.memory_space<vmem>>, %arg5: memref<16x128xbf16, #tpu.memory_space<vmem>>) attributes {dimension_semantics = [#tpu.dimension_semantics<parallel>, #tpu.dimension_semantics<parallel>], iteration_bounds = array<i64: 1, 2>, scalar_prefetch = 0 : i64, scratch_operands = 0 : i64, tpu.core_type = #tpu.core_type<tc>, window_params = [{transform_indices = @transform_0, window_bounds = array<i64: 16, 32>}, {transform_indices = @transform_1, window_bounds = array<i64: 1, 1, 256>}, {pipeline_mode = #tpu.pipeline_mode<synchronous>, transform_indices = @transform_2, window_bounds = array<i64: 256, 128>}, {transform_indices = @transform_3, window_bounds = array<i64: 16, 128>}]} {
    %c0 = arith.constant 0 : index
    %c0_0 = arith.constant 0 : index
    %0 = vector.load %arg2[%c0, %c0_0] : memref<16x32xf32, #tpu.memory_space<vmem>>, vector<16x32xf32>
    %1 = tpu.concatenate %0, %0, %0, %0, %0, %0, %0, %0 in 1 : vector<16x32xf32>, vector<16x32xf32>, vector<16x32xf32>, vector<16x32xf32>, vector<16x32xf32>, vector<16x32xf32>, vector<16x32xf32>, vector<16x32xf32> -> vector<16x256xf32>
    %c0_1 = arith.constant 0 : index
    %c0_2 = arith.constant 0 : index
    %c0_3 = arith.constant 0 : index
    %2 = vector.load %arg3[%c0_1, %c0_2, %c0_3] : memref<1x1x256xf32, #tpu.memory_space<vmem>>, vector<1x1x256xf32>
    %3 = vector.shape_cast %2 : vector<1x1x256xf32> to vector<1x256xf32>
    %4 = vector.broadcast %3 : vector<1x256xf32> to vector<16x256xf32>
    %5 = arith.addf %1, %4 : vector<16x256xf32>
    %6 = math.tanh %5 : vector<16x256xf32>
    %7 = arith.truncf %6 : vector<16x256xf32> to vector<16x256xbf16>
    %c0_4 = arith.constant 0 : index
    %c0_5 = arith.constant 0 : index
    %8 = vector.load %arg4[%c0_4, %c0_5] : memref<256x128xbf16, #tpu.memory_space<vmem>>, vector<256x128xbf16>
    %cst = arith.constant dense<0.000000e+00> : vector<16x128xf32>
    %9 = tpu.matmul %7, %8, %cst {dimension_numbers = #tpu.dot_dimension_numbers<[1], [0], [0], [1], [0, 0, 1, 1], [], []>} : vector<16x256xbf16>, vector<256x128xbf16>, vector<16x128xf32> -> vector<16x128xf32>
    %10 = arith.truncf %9 : vector<16x128xf32> to vector<16x128xbf16>
    %c0_6 = arith.constant 0 : index
    %c0_7 = arith.constant 0 : index
    %11 = vector.load %arg5[%c0_6, %c0_7] : memref<16x128xbf16, #tpu.memory_space<vmem>>, vector<16x128xbf16>
    tpu.vector_store %arg5[%c0_6, %c0_7], %10 {strides = array<i32>} : memref<16x128xbf16, #tpu.memory_space<vmem>>, vector<16x128xbf16>,
    return
  }
  func.func @transform_0(%arg0: i32, %arg1: i32) -> (i32, i32) {
    %c0_i32 = arith.constant 0 : i32
    %c0_i32_0 = arith.constant 0 : i32
    return %arg0, %c0_i32 : i32, i32
  }
  func.func @transform_1(%arg0: i32, %arg1: i32) -> (i32, i32, i32) {
    %c0_i32 = arith.constant 0 : i32
    %c0_i32_0 = arith.constant 0 : i32
    %c0_i32_1 = arith.constant 0 : i32
    return %arg1, %c0_i32, %c0_i32_0 : i32, i32, i32
  }
  func.func @transform_2(%arg0: i32, %arg1: i32) -> (i32, i32) {
    %c0_i32 = arith.constant 0 : i32
    %c0_i32_0 = arith.constant 0 : i32
    %c0_i32_1 = arith.constant 0 : i32
    return %c0_i32, %c0_i32_0 : i32, i32
  }
  func.func @transform_3(%arg0: i32, %arg1: i32) -> (i32, i32) {
    %c0_i32 = arith.constant 0 : i32
    return %arg0, %arg1 : i32, i32
  }
}

</mosaic_0001>

<llo_original>
// kernel: tpu_custom_call.1
$region0: #{tpu_custom_call.1}
  #allocation0 [shape = 'u32[]', space=smem, size = 0x4, offset = 0x4, fixed_abs, tag = 'smem constant byte address 0x4 - core index']
  #allocation1 [shape = 'u32[144,128]{1,0:T(1,128)}', space=vmem, size = 0x12000, scoped, tag = 'internal scratch']
  %s0 = inlined_call_operand.hbm [shape: f32[16,32], index: 0, kind: input, shape index: {}]
  %s1 = inlined_call_operand.hbm [shape: f32[2,1,256], index: 1, kind: input, shape index: {}]
  %s2 = inlined_call_operand.hbm [shape: bf16[256,128], index: 2, kind: input, shape index: {}]
  %s3 = inlined_call_operand.hbm [shape: bf16[16,256], index: 3, kind: output, shape index: {}]
  %s4 = sld [smem:[#allocation0]]
  $region57: #{tpu_custom_call.1} parent=0
    _
  %s6 = ssub.s32 1, %s4
  %s7 = scalar_select 0, %s6, %s4
  $region1: #{tpu_custom_call.1} parent=0
    #allocation2 [shape = 'u8[8192]{0}', space=vmem, size = 0x2000, scoped, tag = 'input window, operand 0, single buffered']
    #allocation3 [shape = 's32[2]{0}', space=sflag, size = 0x8, scoped, tag = 'scoped memory for tpu_custom_call.1']
    #allocation4 [shape = 's32[2]{0}', space=sflag, size = 0x8, scoped, tag = 'scoped memory for tpu_custom_call.1']
    #allocation5 [shape = 'u8[2048]{0}', space=vmem, size = 0x800, scoped, tag = 'input window, operand 1']
    #allocation6 [shape = 's32[2]{0}', space=sflag, size = 0x8, scoped, tag = 'scoped memory for tpu_custom_call.1']
    #allocation7 [shape = 'u8[65536]{0}', space=vmem, size = 0x10000, scoped, tag = 'input window, operand 2, single buffered']
    #allocation8 [shape = 'u8[8192]{0}', space=vmem, size = 0x2000, scoped, tag = 'output window, operand 0']
    %8 = vsyncpa [#allocation3], 0
    %9 = vsyncpa [#allocation6], 0
    %s10 = scalar_lea.sflag [#allocation6], 1
    %11 = vsyncpa %s10, 0
    %12 = vsyncpa [#allocation4], 0
    %s13 = scalar_lea.sflag [#allocation4], 1
    %14 = vsyncpa %s13, 0
    loop: start=0, step=1, limit=4
    $region2: #{tpu_custom_call.1} parent=1 // loop_pre_header
      _
    $region3: #{tpu_custom_call.1} parent=1 // loop_header
      %s16 = sphi 0, %s20
      %p17 = scmp.ge.s32.totalorder %s16, 4
      %s23 = sphi 0, %s35
      %s24 = sphi 0, %s31
      %s25 = sphi 0, %s23
      %s26 = sphi 0, %s24
      %s27 = sphi 0, %s25
      %s28 = sphi 0, %s26
      %s38 = sphi 0, %s40
      %s41 = sphi 0, %s38
      %s42 = sphi 0, %s41
      %s58 = sphi 0, %s42
      %s64 = sphi 0, %s66
      %s67 = sphi 0, %s64
      %s68 = sphi 0, %s67
      %s84 = sphi 0, %s68
      %s88 = sphi 0, %s88
      %s90 = sphi 0, %s88
      %s91 = sphi 0, %s90
      %s105 = sphi 0, %s91
      %s113 = sphi 0, %s115
      %s116 = sphi 0, %s113
      %s117 = sphi 0, %s116
      %s133 = sphi 0, %s117
    $region4: #{tpu_custom_call.1} parent=1 // loop_header_branch
      %19 = sbr.rel (%p17) target = $region8
    $region5: #{tpu_custom_call.1} parent=1 // loop_body
      %s21 = ssub.s32 %s16, 1
      %s22 = ssub.s32 %s16, 2
      %s29 = sadd.s32 1, %s24
      %p30 = scmp.ge.s32.totalorder %s29, 2
      %s31 = scalar_select %p30, 0, %s29
      %s32 = sadd.s32 1, %s23
      %s33 = scalar_select %p30, %s32, %s23
      %p34 = scmp.ge.s32.totalorder %s33, 1
      %s35 = scalar_select %p34, 0, %s33
      %s36 = ssub.s32 %s23, %s35
      %p37 = scmp.eq.s32.totalorder %s36, 0
      %s39 = sadd.s32 %s38, 1
      %s40 = scalar_select %p37, %s38, %s39
      %p43 = pneg %p37
      %p44 = scmp.eq.s32.totalorder %s16, 1
      %p45 = por %p43, %p44
      %p46 = scmp.ne.s32.totalorder %s38, %s41
      %p47 = scmp.eq.s32.totalorder %s16, 0
      %p48 = por %p46, %p47
      %p49 = scmp.ne.s32.totalorder %s38, %s41
      %p50 = scmp.eq.s32.totalorder %s21, 1
      %p51 = por %p49, %p50
      %p52 = scmp.ne.s32.totalorder %s41, %s42
      %p53 = scmp.eq.s32.totalorder %s21, 0
      %p54 = por %p52, %p53
      %p55 = scmp.ne.s32.totalorder %s41, %s42
      %p56 = scmp.eq.s32.totalorder %s22, 1
      %p57 = por %p55, %p56
      %p59 = scmp.ne.s32.totalorder %s42, %s58
      %p60 = scmp.eq.s32.totalorder %s22, 0
      %p61 = por %p59, %p60
      %s62 = ssub.s32 %s24, %s31
      %p63 = scmp.eq.s32.totalorder %s62, 0
      %s65 = sadd.s32 %s64, 1
      %s66 = scalar_select %p63, %s64, %s65
      %p69 = pneg %p63
      %p70 = scmp.eq.s32.totalorder %s16, 1
      %p71 = por %p69, %p70
      %p72 = scmp.ne.s32.totalorder %s64, %s67
      %p73 = scmp.eq.s32.totalorder %s16, 0
      %p74 = por %p72, %p73
      %p75 = scmp.ne.s32.totalorder %s64, %s67
      %p76 = scmp.eq.s32.totalorder %s21, 1
      %p77 = por %p75, %p76
      %p78 = scmp.ne.s32.totalorder %s67, %s68
      %p79 = scmp.eq.s32.totalorder %s21, 0
      %p80 = por %p78, %p79
      %p81 = scmp.ne.s32.totalorder %s67, %s68
      %p82 = scmp.eq.s32.totalorder %s22, 1
      %p83 = por %p81, %p82
      %p85 = scmp.ne.s32.totalorder %s68, %s84
      %p86 = scmp.eq.s32.totalorder %s22, 0
      %p87 = por %p85, %p86
      %s89 = sadd.s32 %s88, 1
      %p92 = scmp.eq.s32.totalorder %s16, 1
      %p93 = scmp.ne.s32.totalorder %s88, %s90
      %p94 = scmp.eq.s32.totalorder %s16, 0
      %p95 = por %p93, %p94
      %p96 = scmp.ne.s32.totalorder %s88, %s90
      %p97 = scmp.eq.s32.totalorder %s21, 1
      %p98 = por %p96, %p97
      %p99 = scmp.ne.s32.totalorder %s90, %s91
      %p100 = scmp.eq.s32.totalorder %s21, 0
      %p101 = por %p99, %p100
      %p102 = scmp.ne.s32.totalorder %s90, %s91
      %p103 = scmp.eq.s32.totalorder %s22, 1
      %p104 = por %p102, %p103
      %p106 = scmp.ne.s32.totalorder %s91, %s105
      %p107 = scmp.eq.s32.totalorder %s22, 0
      %p108 = por %p106, %p107
      %s109 = ssub.s32 %s23, %s35
      %s110 = ssub.s32 %s24, %s31
      %s111 = sor.u32 %s109, %s110
      %p112 = scmp.eq.s32.totalorder %s111, 0
      %s114 = sadd.s32 %s113, 1
      %s115 = scalar_select %p112, %s113, %s114
      %p118 = pneg %p112
      %p119 = scmp.eq.s32.totalorder %s16, 1
      %p120 = por %p118, %p119
      %p121 = scmp.ne.s32.totalorder %s113, %s116
      %p122 = scmp.eq.s32.totalorder %s16, 0
      %p123 = por %p121, %p122
      %p124 = scmp.ne.s32.totalorder %s113, %s116
      %p125 = scmp.eq.s32.totalorder %s21, 1
      %p126 = por %p124, %p125
      %p127 = scmp.ne.s32.totalorder %s116, %s117
      %p128 = scmp.eq.s32.totalorder %s21, 0
      %p129 = por %p127, %p128
      %p130 = scmp.ne.s32.totalorder %s116, %s117
      %p131 = scmp.eq.s32.totalorder %s22, 1
      %p132 = por %p130, %p131
      %p134 = scmp.ne.s32.totalorder %s117, %s133
      %p135 = scmp.eq.s32.totalorder %s22, 0
      %p136 = por %p134, %p135
      %p137 = scmp.le.s32.totalorder 1, %s16
      %p138 = scmp.lt.s32.totalorder %s16, 3
      %p139 = pnand %p137, %p138
      %p140 = pneg %p139
      // Predicated region
      $region9: #{tpu_custom_call.1} parent=5 // pred_check
        _
      $region10: #{tpu_custom_call.1} parent=5 // pred_check_branch
        %142 = sbr.rel (%p139) target = $region12
      $region11: #{tpu_custom_call.1} parent=5 // pred_region
        %s143 = ssub.s32 %s16, 1
        // Predicated region
        $region13: #{tpu_custom_call.1} parent=11 // pred_check
          %p144 = pneg %p54
        $region14: #{tpu_custom_call.1} parent=11 // pred_check_branch
          %146 = sbr.rel (%p144) target = $region16
        $region15: #{tpu_custom_call.1} parent=11 // pred_region
          %s147 = smul.u32 2, %s25
          %s149 = ssub.s32 256, 256
          %150 = vsyncadd [#allocation3], %s149
          %s151 = smul.addr %s147, 128
          %s152 = scalar_lea.hbm %s0, %s151
          %s153 = sshll.u32 [#allocation2], 4
          %s154 = int_to_ptr.vmem [resolvable:$true] %s153
          %159 = dma.hbm_to_vmem [thread:$0]  %s152, 256, %s154, [#allocation3], 128, 128, 8
        $region16: #{tpu_custom_call.1} parent=11 // pred_fallthru
          _
        // Predicated region
        $region17: #{tpu_custom_call.1} parent=11 // pred_check
          %p160 = pneg %p101
        $region18: #{tpu_custom_call.1} parent=11 // pred_check_branch
          %162 = sbr.rel (%p160) target = $region20
        $region19: #{tpu_custom_call.1} parent=11 // pred_region
          %s164 = ssub.s32 2048, 2048
          %165 = vsyncadd [#allocation6], %s164
          %s166 = sshll.u32 [#allocation7], 4
          %s167 = int_to_ptr.vmem [resolvable:$true] %s166
          %172 = dma.hbm_to_vmem [thread:$0]  %s2, 2048, %s167, [#allocation6], 64, 64, 4
        $region20: #{tpu_custom_call.1} parent=11 // pred_fallthru
          _
      $region12: #{tpu_custom_call.1} parent=5 // pred_fallthru
        _
      %p173 = scmp.lt.s32.totalorder %s16, 2
      // Predicated region
      $region21: #{tpu_custom_call.1} parent=5 // pred_check
        %p174 = pneg %p173
      $region22: #{tpu_custom_call.1} parent=5 // pred_check_branch
        %176 = sbr.rel (%p174) target = $region24
      $region23: #{tpu_custom_call.1} parent=5 // pred_region
        // Predicated region
        $region25: #{tpu_custom_call.1} parent=23 // pred_check
          %p177 = pneg %p74
        $region26: #{tpu_custom_call.1} parent=23 // pred_check_branch
          %179 = sbr.rel (%p177) target = $region28
        $region27: #{tpu_custom_call.1} parent=23 // pred_region
          %s180 = sand.u32 %s16, 1
          %s181 = scalar_lea.sflag [#allocation6], %s180
          %s182 = sand.u32 %s64, 1
          %s183 = smul.addr %s182, 2
          %s184 = scalar_lea.vmem [#allocation5], %s183
          %s186 = ssub.s32 32, 32
          %187 = vsyncadd %s181, %s186
          %s188 = smul.addr %s24, 2
          %s189 = smul.addr %s188, 16
          %s190 = scalar_lea.hbm %s1, %s189
          %s192 = sshll.u32 %s184, 4
          %s193 = int_to_ptr.vmem [resolvable:$true] %s192
          %195 = dma.hbm_to_vmem [thread:$0]  %s190, 32, %s193, %s181
        $region28: #{tpu_custom_call.1} parent=23 // pred_fallthru
          _
      $region24: #{tpu_custom_call.1} parent=5 // pred_fallthru
        _
      %p196 = scmp.le.s32.totalorder 1, %s16
      %p197 = scmp.lt.s32.totalorder %s16, 3
      %p198 = pnand %p196, %p197
      %p199 = pneg %p198
      // Predicated region
      $region29: #{tpu_custom_call.1} parent=5 // pred_check
        _
      $region30: #{tpu_custom_call.1} parent=5 // pred_check_branch
        %201 = sbr.rel (%p198) target = $region32
      $region31: #{tpu_custom_call.1} parent=5 // pred_region
        %s202 = ssub.s32 %s16, 1
        // Predicated region
        $region33: #{tpu_custom_call.1} parent=31 // pred_check
          %p203 = pneg %p54
        $region34: #{tpu_custom_call.1} parent=31 // pred_check_branch
          %205 = sbr.rel (%p203) target = $region36
        $region35: #{tpu_custom_call.1} parent=31 // pred_region
          %206 = dma.done [#allocation3], 256
        $region36: #{tpu_custom_call.1} parent=31 // pred_fallthru
          _
        %s207 = sand.u32 %s21, 1
        %s208 = scalar_lea.sflag [#allocation6], %s207
        %s209 = sand.u32 %s67, 1
        %s210 = smul.addr %s209, 2
        %s211 = scalar_lea.vmem [#allocation5], %s210
        // Predicated region
        $region37: #{tpu_custom_call.1} parent=31 // pred_check
          %p212 = pneg %p80
        $region38: #{tpu_custom_call.1} parent=31 // pred_check_branch
          %214 = sbr.rel (%p212) target = $region40
        $region39: #{tpu_custom_call.1} parent=31 // pred_region
          %215 = dma.done %s208, 32
        $region40: #{tpu_custom_call.1} parent=31 // pred_fallthru
          _
        // Predicated region
        $region41: #{tpu_custom_call.1} parent=31 // pred_check
          %p216 = pneg %p101
        $region42: #{tpu_custom_call.1} parent=31 // pred_check_branch
          %218 = sbr.rel (%p216) target = $region44
        $region43: #{tpu_custom_call.1} parent=31 // pred_region
          %219 = dma.done [#allocation6], 2048
        $region44: #{tpu_custom_call.1} parent=31 // pred_fallthru
          _
        %p220 = pneg %p54
        %p221 = pneg %p51
        %s222 = sand.u32 %s21, 1
        %s223 = scalar_lea.sflag [#allocation6], %s222
        %s224 = sand.u32 %s67, 1
        %s225 = smul.addr %s224, 2
        %s226 = scalar_lea.vmem [#allocation5], %s225
        %p227 = pneg %p80
        %p228 = pneg %p77
        %p229 = pneg %p101
        %p230 = pneg %p98
        %p231 = pneg %p129
        %p232 = pneg %p126
        %s233 = sand.u32 %s116, 1
        %s234 = scalar_lea.sflag [#allocation4], %s233
        %s235 = sand.u32 %s116, 1
        %s236 = smul.addr %s235, 8
        %s237 = scalar_lea.vmem [#allocation8], %s236
        %s238 = smul.u32 2, %s25
        %s239 = smul.u32 2, %s25
        %v241 = vld [vmem:[#allocation2] sm:$0xff]
        %v242 = vld [vmem:[#allocation2 + $0x8] sm:$0xff]
        %245 = vrot.lane.b32.xlu0 %v241, 32
        %v246 = vpop.permute.xlu0 %245
        %247 = vrot.lane.b32.xlu0 %v242, 32
        %v248 = vpop.permute.xlu0 %247
        %251 = vrot.lane.b32.xlu0 %v241, 64
        %v252 = vpop.permute.xlu0 %251
        %253 = vrot.lane.b32.xlu0 %v242, 64
        %v254 = vpop.permute.xlu0 %253
        %257 = vrot.lane.b32.xlu0 %v241, 96
        %v258 = vpop.permute.xlu0 %257
        %259 = vrot.lane.b32.xlu0 %v242, 96
        %v260 = vpop.permute.xlu0 %259
        %vm263 = vcmask 261120
        %v264 = vsel %vm263, %v241, %v246
        %v265 = vsel %vm263, %v242, %v248
        %vm266 = vcmask 523264
        %v267 = vsel %vm266, %v264, %v252
        %v268 = vsel %vm266, %v265, %v254
        %vm269 = vcmask 785408
        %v270 = vsel %vm269, %v267, %v258
        %v271 = vsel %vm269, %v268, %v260
        %v272 = vld [vmem:[%s211] sm:$0x3]
        %v274 = vlaneseq
        %v275 = vshrl.u32 %v274, 7
        %v276 = vsub.s32 0, %v275
        %v277 = vrot.slane %v272, %v276
        %v278 = vlaneseq
        %v279 = vshrl.u32 %v278, 7
        %v280 = vsub.s32 1, %v279
        %v281 = vrot.slane %v272, %v280
        %v284 = vadd.f32 %v270, %v277
        %v285 = vadd.f32 %v270, %v281
        %v286 = vadd.f32 %v271, %v277
        %v287 = vadd.f32 %v271, %v281
        %v288 = vtanh.pop %v284
        %v289 = vtanh.pop %v285
        %v290 = vtanh.pop %v286
        %v291 = vtanh.pop %v287
        %v292 = vpack.c.bf16 %v290, %v288
        %v293 = vpack.c.bf16 %v291, %v289
        %v294 = vld [vmem:[#allocation7] sm:$0xf]
        %v295 = vld [vmem:[#allocation7 + $0x4] sm:$0xf]
        %v296 = vld [vmem:[#allocation7 + $0x8] sm:$0xf]
        %v297 = vld [vmem:[#allocation7 + $0xc] sm:$0xf]
        %v298 = vld [vmem:[#allocation7 + $0x10] sm:$0xf]
        %v299 = vld [vmem:[#allocation7 + $0x14] sm:$0xf]
        %v300 = vld [vmem:[#allocation7 + $0x18] sm:$0xf]
        %v301 = vld [vmem:[#allocation7 + $0x1c] sm:$0xf]
        %v302 = vld [vmem:[#allocation7 + $0x20] sm:$0xf]
        %v303 = vld [vmem:[#allocation7 + $0x24] sm:$0xf]
        %v304 = vld [vmem:[#allocation7 + $0x28] sm:$0xf]
        %v305 = vld [vmem:[#allocation7 + $0x2c] sm:$0xf]
        %v306 = vld [vmem:[#allocation7 + $0x30] sm:$0xf]
        %v307 = vld [vmem:[#allocation7 + $0x34] sm:$0xf]
        %v308 = vld [vmem:[#allocation7 + $0x38] sm:$0xf]
        %v309 = vld [vmem:[#allocation7 + $0x3c] sm:$0xf]
        %v310 = vld [vmem:[#allocation7 + $0x40] sm:$0xf]
        %v311 = vld [vmem:[#allocation7 + $0x44] sm:$0xf]
        %v312 = vld [vmem:[#allocation7 + $0x48] sm:$0xf]
        %v313 = vld [vmem:[#allocation7 + $0x4c] sm:$0xf]
        %v314 = vld [vmem:[#allocation7 + $0x50] sm:$0xf]
        %v315 = vld [vmem:[#allocation7 + $0x54] sm:$0xf]
        %v316 = vld [vmem:[#allocation7 + $0x58] sm:$0xf]
        %v317 = vld [vmem:[#allocation7 + $0x5c] sm:$0xf]
        %v318 = vld [vmem:[#allocation7 + $0x60] sm:$0xf]
        %v319 = vld [vmem:[#allocation7 + $0x64] sm:$0xf]
        %v320 = vld [vmem:[#allocation7 + $0x68] sm:$0xf]
        %v321 = vld [vmem:[#allocation7 + $0x6c] sm:$0xf]
        %v322 = vld [vmem:[#allocation7 + $0x70] sm:$0xf]
        %v323 = vld [vmem:[#allocation7 + $0x74] sm:$0xf]
        %v324 = vld [vmem:[#allocation7 + $0x78] sm:$0xf]
        %v325 = vld [vmem:[#allocation7 + $0x7c] sm:$0xf]
        %v358 = vunpack.c.l.b16 %v294
        %v359 = vunpack.c.l.b16 %v295
        %v360 = vunpack.c.l.b16 %v296
        %v361 = vunpack.c.l.b16 %v297
        %v362 = vunpack.c.l.b16 %v298
        %v363 = vunpack.c.l.b16 %v299
        %v364 = vunpack.c.l.b16 %v300
        %v365 = vunpack.c.l.b16 %v301
        %v366 = vunpack.c.l.b16 %v302
        %v367 = vunpack.c.l.b16 %v303
        %v368 = vunpack.c.l.b16 %v304
        %v369 = vunpack.c.l.b16 %v305
        %v370 = vunpack.c.l.b16 %v306
        %v371 = vunpack.c.l.b16 %v307
        %v372 = vunpack.c.l.b16 %v308
        %v373 = vunpack.c.l.b16 %v309
        %v374 = vunpack.c.l.b16 %v310
        %v375 = vunpack.c.l.b16 %v311
        %v376 = vunpack.c.l.b16 %v312
        %v377 = vunpack.c.l.b16 %v313
        %v378 = vunpack.c.l.b16 %v314
        %v379 = vunpack.c.l.b16 %v315
        %v380 = vunpack.c.l.b16 %v316
        %v381 = vunpack.c.l.b16 %v317
        %v382 = vunpack.c.l.b16 %v318
        %v383 = vunpack.c.l.b16 %v319
        %v384 = vunpack.c.l.b16 %v320
        %v385 = vunpack.c.l.b16 %v321
        %v386 = vunpack.c.l.b16 %v322
        %v387 = vunpack.c.l.b16 %v323
        %v388 = vunpack.c.l.b16 %v324
        %v389 = vunpack.c.l.b16 %v325
        %v390 = vpack.c.b16 %v359, %v358
        %v391 = vpack.c.b16 %v361, %v360
        %v392 = vpack.c.b16 %v363, %v362
        %v393 = vpack.c.b16 %v365, %v364
        %v394 = vpack.c.b16 %v367, %v366
        %v395 = vpack.c.b16 %v369, %v368
        %v396 = vpack.c.b16 %v371, %v370
        %v397 = vpack.c.b16 %v373, %v372
        %v398 = vpack.c.b16 %v375, %v374
        %v399 = vpack.c.b16 %v377, %v376
        %v400 = vpack.c.b16 %v379, %v378
        %v401 = vpack.c.b16 %v381, %v380
        %v402 = vpack.c.b16 %v383, %v382
        %v403 = vpack.c.b16 %v385, %v384
        %v404 = vpack.c.b16 %v387, %v386
        %v405 = vpack.c.b16 %v389, %v388
        %422 = vmatprep.subr.bf16.mxu0 0
        %423 = vmatpush1.bf16.msra.mxu0 %v397
        %424 = vmatprep.subr.bf16.mxu0 0
        %425 = vmatpush1.bf16.msra.mxu0 %v396
        %426 = vmatprep.subr.bf16.mxu0 0
        %427 = vmatpush1.bf16.msra.mxu0 %v395
        %428 = vmatprep.subr.bf16.mxu0 0
        %429 = vmatpush1.bf16.msra.mxu0 %v394
        %430 = vmatprep.subr.bf16.mxu0 0
        %431 = vmatpush1.bf16.msra.mxu0 %v393
        %432 = vmatprep.subr.bf16.mxu0 0
        %433 = vmatpush1.bf16.msra.mxu0 %v392
        %434 = vmatprep.subr.bf16.mxu0 0
        %435 = vmatpush1.bf16.msra.mxu0 %v391
        %436 = vmatprep.subr.bf16.mxu0 0
        %437 = vmatpush1.bf16.msra.mxu0 %v390
        %438 = vmatprep.subr.bf16.mxu0 0
        %439 = vmatpush2.bf16.msra.mxu0 %v405
        %440 = vmatprep.subr.bf16.mxu0 0
        %441 = vmatpush2.bf16.msra.mxu0 %v404
        %442 = vmatprep.subr.bf16.mxu0 0
        %443 = vmatpush2.bf16.msra.mxu0 %v403
        %444 = vmatprep.subr.bf16.mxu0 0
        %445 = vmatpush2.bf16.msra.mxu0 %v402
        %446 = vmatprep.subr.bf16.mxu0 0
        %447 = vmatpush2.bf16.msra.mxu0 %v401
        %448 = vmatprep.subr.bf16.mxu0 0
        %449 = vmatpush2.bf16.msra.mxu0 %v400
        %450 = vmatprep.subr.bf16.mxu0 0
        %451 = vmatpush2.bf16.msra.mxu0 %v399
        %452 = vmatprep.subr.bf16.mxu0 0
        %453 = vmatpush2.bf16.msra.mxu0 %v398
        %454 = vmatprep.mubr.bf16.mxu0 %v293
        %455 = vmatmul.mubr.bf16.gmra.mxu0 %v292
        %v456 = vpop.f32.mrf.mxu0
        %v457 = vadd.f32 0.0, %v456
        %v458 = vpop.f32.mrf.mxu0
        %v459 = vpop.f32.mrf.mxu0
        %v460 = vadd.f32 0.0, %v459
        %v461 = vpop.f32.mrf.mxu0
        %462 = vdwg.mxu0
        %v463 = vpack.c.bf16 %v460, %v457
        %v465 = vunpack.c.l.b16 %v463
        %v466 = vunpack.c.h.b16 %v463
        %v467 = vpack.c.b16 %v465, %v465
        %v468 = vpack.c.b16 %v466, %v466
        %471 = vst [vmem:[%s237] sm:$0xf] %v467
        %472 = vst [vmem:[%s237 + $0x4] sm:$0xf] %v468
        %s473 = sand.u32 %s116, 1
        %s474 = scalar_lea.sflag [#allocation4], %s473
        %s475 = sand.u32 %s116, 1
        %s476 = smul.addr %s475, 8
        %s477 = scalar_lea.vmem [#allocation8], %s476
        // Predicated region
        $region45: #{tpu_custom_call.1} parent=31 // pred_check
          %p478 = pneg %p126
        $region46: #{tpu_custom_call.1} parent=31 // pred_check_branch
          %480 = sbr.rel (%p478) target = $region48
        $region47: #{tpu_custom_call.1} parent=31 // pred_region
          %s481 = smul.u32 2, %s25
          %s483 = ssub.s32 128, 128
          %484 = vsyncadd %s474, %s483
          %s485 = smul.addr %s481, 2
          %s486 = sadd.s32 %s26, %s485
          %s487 = smul.addr %s486, 64
          %s488 = scalar_lea.hbm %s3, %s487
          %s489 = sshll.u32 %s477, 4
          %s490 = int_to_ptr.vmem [resolvable:$true] %s489
          %495 = dma.vmem_to_hbm [thread:$0]  %s490, 128, %s488, %s474, 64, 128, 4
        $region48: #{tpu_custom_call.1} parent=31 // pred_fallthru
          _
      $region32: #{tpu_custom_call.1} parent=5 // pred_fallthru
        _
      %p496 = scmp.le.s32.totalorder 2, %s16
      // Predicated region
      $region49: #{tpu_custom_call.1} parent=5 // pred_check
        %p497 = pneg %p496
      $region50: #{tpu_custom_call.1} parent=5 // pred_check_branch
        %499 = sbr.rel (%p497) target = $region52
      $region51: #{tpu_custom_call.1} parent=5 // pred_region
        %s500 = ssub.s32 %s16, 2
        // Predicated region
        $region53: #{tpu_custom_call.1} parent=51 // pred_check
          %p501 = pneg %p132
        $region54: #{tpu_custom_call.1} parent=51 // pred_check_branch
          %503 = sbr.rel (%p501) target = $region56
        $region55: #{tpu_custom_call.1} parent=51 // pred_region
          %s504 = sand.u32 %s117, 1
          %s505 = scalar_lea.sflag [#allocation4], %s504
          %s506 = sand.u32 %s117, 1
          %s507 = smul.addr %s506, 8
          %s508 = scalar_lea.vmem [#allocation8], %s507
          %509 = dma.done %s505, 128
        $region56: #{tpu_custom_call.1} parent=51 // pred_fallthru
          _
      $region52: #{tpu_custom_call.1} parent=5 // pred_fallthru
        _
    $region6: #{tpu_custom_call.1} parent=1 // loop_footer
      %s20 = sadd.s32 1, %s16
    $region7: #{tpu_custom_call.1} parent=1 // loop_footer_branch
      %15 = sbr.rel target = $region3
    $region8: #{tpu_custom_call.1} parent=1 // loop_exit
      _
    %510 = vsyncpa [#allocation3], 1
    %s511 = scalar_lea.sflag [#allocation3], 1
    %512 = vsyncpa %s511, 1
    %513 = vsyncpa [#allocation6], 1
    %s514 = scalar_lea.sflag [#allocation6], 1
    %515 = vsyncpa %s514, 1
    %516 = vsyncpa [#allocation4], 1
    %s517 = scalar_lea.sflag [#allocation4], 1
    %518 = vsyncpa %s517, 1

</llo_original>
